<compile_context>
chip_gen: v7x
topology: tpu7x:2x2x1
jax: 0.10.0
libtpu: 0.0.40
codegen_flags: <defaults>
</compile_context>

<pallas_src>
import functools

import jax
import jax.numpy as jnp
from jax import lax
from jax.experimental import pallas as pl
from jax.experimental.pallas import tpu as pltpu


def _pono_kernel(x_ref, y_ref, mean_ref, std_ref, *, eps, n_channels):
    # x_ref block: (1, C, TS). Reduce over C (sublane axis); lanes stay dense and
    # independent, so a ragged last spatial tile is safe.
    x = x_ref[...].astype(jnp.float32)
    s1 = jnp.sum(x, axis=1, keepdims=True)                 # (1, 1, TS)
    s2 = jnp.sum(x * x, axis=1, keepdims=True)             # (1, 1, TS)
    mean = s1 * (1.0 / n_channels)
    # torch.Tensor.var default is unbiased (correction = 1). C == 1 gives inf/nan,
    # same as torch. Clamp at 0 to guard single-pass cancellation.
    var = jnp.maximum((s2 - s1 * mean) / float(n_channels - 1), 0.0)
    inv_std = lax.rsqrt(var + eps)                          # EUP rsqrt on (1,1,TS)
    y = (x - mean) * inv_std                                # VPU multiplies, no divides
    std = (var + eps) * inv_std                             # == sqrt(var + eps)
    y_ref[...] = y.astype(y_ref.dtype)
    mean_ref[...] = mean.astype(mean_ref.dtype)
    std_ref[...] = std.astype(std_ref.dtype)


def _pono_affine_kernel(x_ref, gamma_ref, beta_ref, y_ref, mean_ref, std_ref,
                        *, eps, n_channels):
    x = x_ref[...].astype(jnp.float32)
    s1 = jnp.sum(x, axis=1, keepdims=True)
    s2 = jnp.sum(x * x, axis=1, keepdims=True)
    mean = s1 * (1.0 / n_channels)
    var = jnp.maximum((s2 - s1 * mean) / float(n_channels - 1), 0.0)
    inv_std = lax.rsqrt(var + eps)
    y = (x - mean) * inv_std
    y = y * gamma_ref[...] + beta_ref[...]                  # gamma/beta stay f32
    std = (var + eps) * inv_std
    y_ref[...] = y.astype(y_ref.dtype)
    mean_ref[...] = mean.astype(mean_ref.dtype)
    std_ref[...] = std.astype(std_ref.dtype)


class PONOPallas:
    """Pallas TPU port of the PyTorch PONO module (forward pass)."""

    def __init__(self, input_size=None, return_stats=False, affine=False, eps=1e-5,
                 block_bytes=4 * 1024 * 1024,
                 vmem_limit_bytes=48 * 1024 * 1024,
                 allow_jnp_fallback=True):
        self.return_stats = return_stats  # stored but unused, same as the PyTorch forward
        self.input_size = input_size
        self.eps = float(eps)
        self.affine = affine
        self.block_bytes = int(block_bytes)
        self.vmem_limit_bytes = int(vmem_limit_bytes)
        self.allow_jnp_fallback = allow_jnp_fallback
        if affine:
            assert input_size is not None
            self.beta = jnp.zeros((1, 1, *input_size), dtype=jnp.float32)
            self.gamma = jnp.ones((1, 1, *input_size), dtype=jnp.float32)
        else:
            self.beta, self.gamma = None, None

    # Tiny-tensor fallback: XLA fusion wins when C cannot fill a sublane tile or the
    # whole problem is a few KiB (per-call + per-grid-step overhead dominates).
    def _use_fallback(self, N, C, HW, itemsize):
        if not self.allow_jnp_fallback:
            return False
        min_c = 8 if itemsize >= 4 else 16
        return (C < min_c) or (N * C * HW * itemsize < (64 << 10))

    def _jnp_forward(self, x):
        xf = x.astype(jnp.float32)
        mean = jnp.mean(xf, axis=1, keepdims=True)
        var = jnp.var(xf, axis=1, keepdims=True, ddof=1)
        std = jnp.sqrt(var + self.eps)
        y = (xf - mean) / std
        if self.affine:
            y = y * self.gamma + self.beta
        return (y.astype(x.dtype), mean.astype(x.dtype), std.astype(x.dtype))

    def __call__(self, x):
        N, C = x.shape[0], x.shape[1]
        spatial = x.shape[2:]
        HW = 1
        for d in spatial:
            HW *= d
        itemsize = x.dtype.itemsize

        if self._use_fallback(N, C, HW, itemsize):
            return self._jnp_forward(x)

        # Lane-dense spatial tile: multiple of 128; sized so the f32 working set of
        # one block stays around block_bytes (input may be narrower, but the
        # in-kernel temporaries are f32).
        ts_cap = max(128, (self.block_bytes // max(C * 4, 1)) // 128 * 128)
        TS = min(ts_cap, pl.cdiv(HW, 128) * 128)
        n_s = pl.cdiv(HW, TS)

        x3 = x.reshape(N, C, HW)   # free view; no padding, no extra HBM copy

        out_shape = (
            jax.ShapeDtypeStruct((N, C, HW), x.dtype),
            jax.ShapeDtypeStruct((N, 1, HW), x.dtype),
            jax.ShapeDtypeStruct((N, 1, HW), x.dtype),
        )
        cparams = pltpu.CompilerParams(
            dimension_semantics=("parallel", "parallel"),
            vmem_limit_bytes=self.vmem_limit_bytes,
        )

        if self.affine:
            gamma3 = self.gamma.reshape(1, 1, HW).astype(jnp.float32)
            beta3 = self.beta.reshape(1, 1, HW).astype(jnp.float32)
            # Spatial tiles on the OUTER grid axis: the gamma/beta block index only
            # depends on it, so the tile stays VMEM-resident across inner batch steps.
            grid = (n_s, N)
            x_spec = pl.BlockSpec((1, C, TS), lambda s, n: (n, 0, s))
            stat_spec = pl.BlockSpec((1, 1, TS), lambda s, n: (n, 0, s))
            aff_spec = pl.BlockSpec((1, 1, TS), lambda s, n: (0, 0, s))
            kernel = functools.partial(_pono_affine_kernel, eps=self.eps, n_channels=C)
            y3, mean3, std3 = pl.pallas_call(
                kernel,
                out_shape=out_shape,
                grid=grid,
                in_specs=[x_spec, aff_spec, aff_spec],
                out_specs=(x_spec, stat_spec, stat_spec),
                compiler_params=cparams,
            )(x3, gamma3, beta3)
        else:
            grid = (N, n_s)
            x_spec = pl.BlockSpec((1, C, TS), lambda n, s: (n, 0, s))
            stat_spec = pl.BlockSpec((1, 1, TS), lambda n, s: (n, 0, s))
            kernel = functools.partial(_pono_kernel, eps=self.eps, n_channels=C)
            y3, mean3, std3 = pl.pallas_call(
                kernel,
                out_shape=out_shape,
                grid=grid,
                in_specs=[x_spec],
                out_specs=(x_spec, stat_spec, stat_spec),
                compiler_params=cparams,
            )(x3)

        y = y3.reshape(x.shape)
        mean = mean3.reshape((N, 1) + spatial)
        std = std3.reshape((N, 1) + spatial)
        return y, mean, std


def _reference(x, eps, gamma=None, beta=None):
    mean = jnp.mean(x, axis=1, keepdims=True)
    var = jnp.var(x, axis=1, keepdims=True, ddof=1)   # unbiased, like torch default
    std = jnp.sqrt(var + eps)
    y = (x - mean) / std
    if gamma is not None:
        y = y * gamma + beta
    return y, mean, std


def _check(got, ref, atol=1e-4, rtol=1e-4):
    for g, r in zip(got, ref):
        assert g.shape == r.shape, (g.shape, r.shape)
        assert jnp.allclose(g, r, atol=atol, rtol=rtol), float(jnp.max(jnp.abs(g - r)))


if __name__ == "__main__":
    key = jax.random.PRNGKey(0)
    k0, k1, k2, k3, k4 = jax.random.split(key, 5)

    # --- basic (affine=False), small NCHW map; force the Pallas path ---
    x = jax.random.normal(k0, (2, 4, 16, 16), dtype=jnp.float32)
    mod = PONOPallas(allow_jnp_fallback=False)
    out = mod(x)
    jax.block_until_ready(out)
    _check(out, _reference(x, mod.eps))
    assert out[0].shape == x.shape and out[1].shape == (2, 1, 16, 16) and out[2].shape == (2, 1, 16, 16)

    # --- same input, default config (tiny tensor -> jnp fallback path) ---
    out_fb = PONOPallas()(x)
    jax.block_until_ready(out_fb)
    _check(out_fb, _reference(x, 1e-5))

    # --- affine=True with non-trivial gamma/beta (Pallas path, resident f32 params) ---
    mod_aff = PONOPallas(input_size=(16, 16), affine=True, allow_jnp_fallback=False)
    mod_aff.gamma = 1.0 + 0.1 * jax.random.normal(k1, (1, 1, 16, 16), dtype=jnp.float32)
    mod_aff.beta = 0.1 * jax.random.normal(k2, (1, 1, 16, 16), dtype=jnp.float32)
    out_aff = mod_aff(x)
    jax.block_until_ready(out_aff)
    _check(out_aff, _reference(x, mod_aff.eps, mod_aff.gamma, mod_aff.beta))

    # --- spatial size not divisible by 128 (ragged last lane-tile, no host pad/slice) ---
    x_r = jax.random.normal(k3, (2, 8, 5, 7), dtype=jnp.float32)
    out_r = PONOPallas(allow_jnp_fallback=False)(x_r)
    jax.block_until_ready(out_r)
    _check(out_r, _reference(x_r, 1e-5))
    assert out_r[0].shape == x_r.shape and out_r[1].shape == (2, 1, 5, 7)

    # --- medium shape that takes the Pallas path under default settings ---
    x_m = jax.random.normal(k4, (2, 16, 24, 24), dtype=jnp.float32)
    out_m = PONOPallas()(x_m)
    jax.block_until_ready(out_m)
    _check(out_m, _reference(x_m, 1e-5))

    print("KERNEL_OK")
</pallas_src>

<mosaic_0001>
module attributes {stable_mosaic.version = 11 : i64} {
  func.func @_pono_kernel(%arg0: i32, %arg1: i32, %arg2: memref<1x4x256xf32, #tpu.memory_space<vmem>>, %arg3: memref<1x4x256xf32, #tpu.memory_space<vmem>>, %arg4: memref<1x1x256xf32, #tpu.memory_space<vmem>>, %arg5: memref<1x1x256xf32, #tpu.memory_space<vmem>>) attributes {dimension_semantics = [#tpu.dimension_semantics<parallel>, #tpu.dimension_semantics<parallel>], iteration_bounds = array<i64: 2, 1>, scalar_prefetch = 0 : i64, scratch_operands = 0 : i64, tpu.core_type = #tpu.core_type<tc>, window_params = [{transform_indices = @transform_0, window_bounds = array<i64: 1, 4, 256>}, {transform_indices = @transform_1, window_bounds = array<i64: 1, 4, 256>}, {transform_indices = @transform_2, window_bounds = array<i64: 1, 1, 256>}, {transform_indices = @transform_3, window_bounds = array<i64: 1, 1, 256>}]} {
    %c0 = arith.constant 0 : index
    %c0_0 = arith.constant 0 : index
    %c0_1 = arith.constant 0 : index
    %0 = vector.load %arg2[%c0, %c0_0, %c0_1] : memref<1x4x256xf32, #tpu.memory_space<vmem>>, vector<1x4x256xf32>
    %cst = arith.constant dense<0.000000e+00> : vector<1x256xf32>
    %1 = vector.multi_reduction <add>, %0, %cst [1] : vector<1x4x256xf32> to vector<1x256xf32>
    %2 = vector.shape_cast %1 : vector<1x256xf32> to vector<1x1x256xf32>
    %3 = arith.mulf %0, %0 : vector<1x4x256xf32>
    %cst_2 = arith.constant dense<0.000000e+00> : vector<1x256xf32>
    %4 = vector.multi_reduction <add>, %3, %cst_2 [1] : vector<1x4x256xf32> to vector<1x256xf32>
    %5 = vector.shape_cast %4 : vector<1x256xf32> to vector<1x1x256xf32>
    %cst_3 = arith.constant 2.500000e-01 : f32
    %6 = vector.broadcast %cst_3 : f32 to vector<1x1x256xf32>
    %7 = arith.mulf %2, %6 : vector<1x1x256xf32>
    %8 = arith.mulf %2, %7 : vector<1x1x256xf32>
    %9 = arith.subf %5, %8 : vector<1x1x256xf32>
    %cst_4 = arith.constant 3.000000e+00 : f32
    %10 = vector.broadcast %cst_4 : f32 to vector<1x1x256xf32>
    %11 = arith.divf %9, %10 : vector<1x1x256xf32>
    %cst_5 = arith.constant 0.000000e+00 : f32
    %12 = vector.broadcast %cst_5 : f32 to vector<1x1x256xf32>
    %13 = arith.maximumf %11, %12 : vector<1x1x256xf32>
    %cst_6 = arith.constant 9.99999974E-6 : f32
    %14 = vector.broadcast %cst_6 : f32 to vector<1x1x256xf32>
    %15 = arith.addf %13, %14 : vector<1x1x256xf32>
    %16 = math.rsqrt %15 : vector<1x1x256xf32>
    %17 = vector.broadcast %7 : vector<1x1x256xf32> to vector<1x4x256xf32>
    %18 = arith.subf %0, %17 : vector<1x4x256xf32>
    %19 = vector.broadcast %16 : vector<1x1x256xf32> to vector<1x4x256xf32>
    %20 = arith.mulf %18, %19 : vector<1x4x256xf32>
    %cst_7 = arith.constant 9.99999974E-6 : f32
    %21 = vector.broadcast %cst_7 : f32 to vector<1x1x256xf32>
    %22 = arith.addf %13, %21 : vector<1x1x256xf32>
    %23 = arith.mulf %22, %16 : vector<1x1x256xf32>
    %c0_8 = arith.constant 0 : index
    %c0_9 = arith.constant 0 : index
    %c0_10 = arith.constant 0 : index
    %24 = vector.load %arg3[%c0_8, %c0_9, %c0_10] : memref<1x4x256xf32, #tpu.memory_space<vmem>>, vector<1x4x256xf32>
    tpu.vector_store %arg3[%c0_8, %c0_9, %c0_10], %20 {strides = array<i32>} : memref<1x4x256xf32, #tpu.memory_space<vmem>>, vector<1x4x256xf32>,
    %c0_11 = arith.constant 0 : index
    %c0_12 = arith.constant 0 : index
    %c0_13 = arith.constant 0 : index
    %25 = vector.load %arg4[%c0_11, %c0_12, %c0_13] : memref<1x1x256xf32, #tpu.memory_space<vmem>>, vector<1x1x256xf32>
    tpu.vector_store %arg4[%c0_11, %c0_12, %c0_13], %7 {strides = array<i32>} : memref<1x1x256xf32, #tpu.memory_space<vmem>>, vector<1x1x256xf32>,
    %c0_14 = arith.constant 0 : index
    %c0_15 = arith.constant 0 : index
    %c0_16 = arith.constant 0 : index
    %26 = vector.load %arg5[%c0_14, %c0_15, %c0_16] : memref<1x1x256xf32, #tpu.memory_space<vmem>>, vector<1x1x256xf32>
    tpu.vector_store %arg5[%c0_14, %c0_15, %c0_16], %23 {strides = array<i32>} : memref<1x1x256xf32, #tpu.memory_space<vmem>>, vector<1x1x256xf32>,
    return
  }
  func.func @transform_0(%arg0: i32, %arg1: i32) -> (i32, i32, i32) {
    %c0_i32 = arith.constant 0 : i32
    %c0_i32_0 = arith.constant 0 : i32
    return %arg0, %c0_i32, %arg1 : i32, i32, i32
  }
  func.func @transform_1(%arg0: i32, %arg1: i32) -> (i32, i32, i32) {
    %c0_i32 = arith.constant 0 : i32
    %c0_i32_0 = arith.constant 0 : i32
    return %arg0, %c0_i32, %arg1 : i32, i32, i32
  }
  func.func @transform_2(%arg0: i32, %arg1: i32) -> (i32, i32, i32) {
    %c0_i32 = arith.constant 0 : i32
    %c0_i32_0 = arith.constant 0 : i32
    return %arg0, %c0_i32, %arg1 : i32, i32, i32
  }
  func.func @transform_3(%arg0: i32, %arg1: i32) -> (i32, i32, i32) {
    %c0_i32 = arith.constant 0 : i32
    %c0_i32_0 = arith.constant 0 : i32
    return %arg0, %c0_i32, %arg1 : i32, i32, i32
  }
}

</mosaic_0001>

<llo_original>
// kernel: tpu_custom_call.1
$region0: #{tpu_custom_call.1}
  #allocation0 [shape = 'u32[]', space=smem, size = 0x4, offset = 0x4, fixed_abs, tag = 'smem constant byte address 0x4 - core index']
  #allocation1 [shape = 'u32[144,128]{1,0:T(1,128)}', space=vmem, size = 0x12000, scoped, tag = 'internal scratch']
  %s0 = inlined_call_operand.hbm [shape: f32[2,4,256], index: 0, kind: input, shape index: {}]
  %s1 = inlined_call_operand.hbm [shape: f32[2,4,256], index: 1, kind: output, shape index: {0}]
  %s2 = inlined_call_operand.hbm [shape: f32[2,1,256], index: 2, kind: output, shape index: {1}]
  %s3 = inlined_call_operand.hbm [shape: f32[2,1,256], index: 3, kind: output, shape index: {2}]
  %4 = xla_tuple %s1, %s2, %s3
  %s5 = sld [smem:[#allocation0]]
  $region57: #{tpu_custom_call.1} parent=0
    _
  %s7 = ssub.s32 1, %s5
  %s8 = scalar_select 0, %s7, %s5
  $region1: #{tpu_custom_call.1} parent=0
    #allocation2 [shape = 'u8[8192]{0}', space=vmem, size = 0x2000, scoped, tag = 'input window, operand 0']
    #allocation3 [shape = 's32[2]{0}', space=sflag, size = 0x8, scoped, tag = 'scoped memory for tpu_custom_call.1']
    #allocation4 [shape = 's32[2]{0}', space=sflag, size = 0x8, scoped, tag = 'scoped memory for tpu_custom_call.1']
    #allocation5 [shape = 'u8[8192]{0}', space=vmem, size = 0x2000, scoped, tag = 'output window, operand 0']
    #allocation6 [shape = 'u8[2048]{0}', space=vmem, size = 0x800, scoped, tag = 'output window, operand 1']
    #allocation7 [shape = 's32[2]{0}', space=sflag, size = 0x8, scoped, tag = 'scoped memory for tpu_custom_call.1']
    #allocation8 [shape = 'u8[2048]{0}', space=vmem, size = 0x800, scoped, tag = 'output window, operand 2']
    %9 = vsyncpa [#allocation3], 0
    %s10 = scalar_lea.sflag [#allocation3], 1
    %11 = vsyncpa %s10, 0
    %12 = vsyncpa [#allocation4], 0
    %s13 = scalar_lea.sflag [#allocation4], 1
    %14 = vsyncpa %s13, 0
    %15 = vsyncpa [#allocation7], 0
    %s16 = scalar_lea.sflag [#allocation7], 1
    %17 = vsyncpa %s16, 0
    loop: start=0, step=1, limit=4
    $region2: #{tpu_custom_call.1} parent=1 // loop_pre_header
      _
    $region3: #{tpu_custom_call.1} parent=1 // loop_header
      %s19 = sphi 0, %s23
      %p20 = scmp.ge.s32.totalorder %s19, 4
      %s26 = sphi 0, %s38
      %s27 = sphi 0, %s34
      %s28 = sphi 0, %s26
      %s29 = sphi 0, %s27
      %s30 = sphi 0, %s28
      %s31 = sphi 0, %s29
      %s43 = sphi 0, %s45
      %s46 = sphi 0, %s43
      %s47 = sphi 0, %s46
      %s63 = sphi 0, %s47
      %s71 = sphi 0, %s73
      %s74 = sphi 0, %s71
      %s75 = sphi 0, %s74
      %s91 = sphi 0, %s75
      %s99 = sphi 0, %s101
      %s102 = sphi 0, %s99
      %s103 = sphi 0, %s102
      %s119 = sphi 0, %s103
      %s127 = sphi 0, %s129
      %s130 = sphi 0, %s127
      %s131 = sphi 0, %s130
      %s147 = sphi 0, %s131
    $region4: #{tpu_custom_call.1} parent=1 // loop_header_branch
      %22 = sbr.rel (%p20) target = $region8
    $region5: #{tpu_custom_call.1} parent=1 // loop_body
      %s24 = ssub.s32 %s19, 1
      %s25 = ssub.s32 %s19, 2
      %s32 = sadd.s32 1, %s27
      %p33 = scmp.ge.s32.totalorder %s32, 1
      %s34 = scalar_select %p33, 0, %s32
      %s35 = sadd.s32 1, %s26
      %s36 = scalar_select %p33, %s35, %s26
      %p37 = scmp.ge.s32.totalorder %s36, 2
      %s38 = scalar_select %p37, 0, %s36
      %s39 = ssub.s32 %s26, %s38
      %s40 = ssub.s32 %s27, %s34
      %s41 = sor.u32 %s39, %s40
      %p42 = scmp.eq.s32.totalorder %s41, 0
      %s44 = sadd.s32 %s43, 1
      %s45 = scalar_select %p42, %s43, %s44
      %p48 = pneg %p42
      %p49 = scmp.eq.s32.totalorder %s19, 1
      %p50 = por %p48, %p49
      %p51 = scmp.ne.s32.totalorder %s43, %s46
      %p52 = scmp.eq.s32.totalorder %s19, 0
      %p53 = por %p51, %p52
      %p54 = scmp.ne.s32.totalorder %s43, %s46
      %p55 = scmp.eq.s32.totalorder %s24, 1
      %p56 = por %p54, %p55
      %p57 = scmp.ne.s32.totalorder %s46, %s47
      %p58 = scmp.eq.s32.totalorder %s24, 0
      %p59 = por %p57, %p58
      %p60 = scmp.ne.s32.totalorder %s46, %s47
      %p61 = scmp.eq.s32.totalorder %s25, 1
      %p62 = por %p60, %p61
      %p64 = scmp.ne.s32.totalorder %s47, %s63
      %p65 = scmp.eq.s32.totalorder %s25, 0
      %p66 = por %p64, %p65
      %s67 = ssub.s32 %s26, %s38
      %s68 = ssub.s32 %s27, %s34
      %s69 = sor.u32 %s67, %s68
      %p70 = scmp.eq.s32.totalorder %s69, 0
      %s72 = sadd.s32 %s71, 1
      %s73 = scalar_select %p70, %s71, %s72
      %p76 = pneg %p70
      %p77 = scmp.eq.s32.totalorder %s19, 1
      %p78 = por %p76, %p77
      %p79 = scmp.ne.s32.totalorder %s71, %s74
      %p80 = scmp.eq.s32.totalorder %s19, 0
      %p81 = por %p79, %p80
      %p82 = scmp.ne.s32.totalorder %s71, %s74
      %p83 = scmp.eq.s32.totalorder %s24, 1
      %p84 = por %p82, %p83
      %p85 = scmp.ne.s32.totalorder %s74, %s75
      %p86 = scmp.eq.s32.totalorder %s24, 0
      %p87 = por %p85, %p86
      %p88 = scmp.ne.s32.totalorder %s74, %s75
      %p89 = scmp.eq.s32.totalorder %s25, 1
      %p90 = por %p88, %p89
      %p92 = scmp.ne.s32.totalorder %s75, %s91
      %p93 = scmp.eq.s32.totalorder %s25, 0
      %p94 = por %p92, %p93
      %s95 = ssub.s32 %s26, %s38
      %s96 = ssub.s32 %s27, %s34
      %s97 = sor.u32 %s95, %s96
      %p98 = scmp.eq.s32.totalorder %s97, 0
      %s100 = sadd.s32 %s99, 1
      %s101 = scalar_select %p98, %s99, %s100
      %p104 = pneg %p98
      %p105 = scmp.eq.s32.totalorder %s19, 1
      %p106 = por %p104, %p105
      %p107 = scmp.ne.s32.totalorder %s99, %s102
      %p108 = scmp.eq.s32.totalorder %s19, 0
      %p109 = por %p107, %p108
      %p110 = scmp.ne.s32.totalorder %s99, %s102
      %p111 = scmp.eq.s32.totalorder %s24, 1
      %p112 = por %p110, %p111
      %p113 = scmp.ne.s32.totalorder %s102, %s103
      %p114 = scmp.eq.s32.totalorder %s24, 0
      %p115 = por %p113, %p114
      %p116 = scmp.ne.s32.totalorder %s102, %s103
      %p117 = scmp.eq.s32.totalorder %s25, 1
      %p118 = por %p116, %p117
      %p120 = scmp.ne.s32.totalorder %s103, %s119
      %p121 = scmp.eq.s32.totalorder %s25, 0
      %p122 = por %p120, %p121
      %s123 = ssub.s32 %s26, %s38
      %s124 = ssub.s32 %s27, %s34
      %s125 = sor.u32 %s123, %s124
      %p126 = scmp.eq.s32.totalorder %s125, 0
      %s128 = sadd.s32 %s127, 1
      %s129 = scalar_select %p126, %s127, %s128
      %p132 = pneg %p126
      %p133 = scmp.eq.s32.totalorder %s19, 1
      %p134 = por %p132, %p133
      %p135 = scmp.ne.s32.totalorder %s127, %s130
      %p136 = scmp.eq.s32.totalorder %s19, 0
      %p137 = por %p135, %p136
      %p138 = scmp.ne.s32.totalorder %s127, %s130
      %p139 = scmp.eq.s32.totalorder %s24, 1
      %p140 = por %p138, %p139
      %p141 = scmp.ne.s32.totalorder %s130, %s131
      %p142 = scmp.eq.s32.totalorder %s24, 0
      %p143 = por %p141, %p142
      %p144 = scmp.ne.s32.totalorder %s130, %s131
      %p145 = scmp.eq.s32.totalorder %s25, 1
      %p146 = por %p144, %p145
      %p148 = scmp.ne.s32.totalorder %s131, %s147
      %p149 = scmp.eq.s32.totalorder %s25, 0
      %p150 = por %p148, %p149
      %p151 = scmp.le.s32.totalorder 1, %s19
      %p152 = scmp.lt.s32.totalorder %s19, 3
      %p153 = pnand %p151, %p152
      %p154 = pneg %p153
      // Predicated region
      $region9: #{tpu_custom_call.1} parent=5 // pred_check
        _
      $region10: #{tpu_custom_call.1} parent=5 // pred_check_branch
        %156 = sbr.rel (%p153) target = $region12
      $region11: #{tpu_custom_call.1} parent=5 // pred_region
        %s157 = ssub.s32 %s19, 1
      $region12: #{tpu_custom_call.1} parent=5 // pred_fallthru
        _
      %p158 = scmp.lt.s32.totalorder %s19, 2
      // Predicated region
      $region13: #{tpu_custom_call.1} parent=5 // pred_check
        %p159 = pneg %p158
      $region14: #{tpu_custom_call.1} parent=5 // pred_check_branch
        %161 = sbr.rel (%p159) target = $region16
      $region15: #{tpu_custom_call.1} parent=5 // pred_region
        // Predicated region
        $region17: #{tpu_custom_call.1} parent=15 // pred_check
          %p162 = pneg %p53
        $region18: #{tpu_custom_call.1} parent=15 // pred_check_branch
          %164 = sbr.rel (%p162) target = $region20
        $region19: #{tpu_custom_call.1} parent=15 // pred_region
          %s165 = sand.u32 %s43, 1
          %s166 = scalar_lea.sflag [#allocation3], %s165
          %s167 = sand.u32 %s43, 1
          %s168 = smul.addr %s167, 8
          %s169 = scalar_lea.vmem [#allocation2], %s168
          %s170 = smul.u32 2, %s27
          %s172 = ssub.s32 128, 128
          %173 = vsyncadd %s166, %s172
          %s174 = smul.addr %s26, 2
          %s175 = sadd.s32 %s170, %s174
          %s176 = smul.addr %s175, 64
          %s177 = scalar_lea.hbm %s0, %s176
          %s179 = sshll.u32 %s169, 4
          %s180 = int_to_ptr.vmem [resolvable:$true] %s179
          %182 = dma.hbm_to_vmem [thread:$0]  %s177, 128, %s180, %s166
        $region20: #{tpu_custom_call.1} parent=15 // pred_fallthru
          _
      $region16: #{tpu_custom_call.1} parent=5 // pred_fallthru
        _
      %p183 = scmp.le.s32.totalorder 1, %s19
      %p184 = scmp.lt.s32.totalorder %s19, 3
      %p185 = pnand %p183, %p184
      %p186 = pneg %p185
      // Predicated region
      $region21: #{tpu_custom_call.1} parent=5 // pred_check
        _
      $region22: #{tpu_custom_call.1} parent=5 // pred_check_branch
        %188 = sbr.rel (%p185) target = $region24
      $region23: #{tpu_custom_call.1} parent=5 // pred_region
        %s189 = ssub.s32 %s19, 1
        %s190 = sand.u32 %s46, 1
        %s191 = scalar_lea.sflag [#allocation3], %s190
        %s192 = sand.u32 %s46, 1
        %s193 = smul.addr %s192, 8
        %s194 = scalar_lea.vmem [#allocation2], %s193
        // Predicated region
        $region25: #{tpu_custom_call.1} parent=23 // pred_check
          %p195 = pneg %p59
        $region26: #{tpu_custom_call.1} parent=23 // pred_check_branch
          %197 = sbr.rel (%p195) target = $region28
        $region27: #{tpu_custom_call.1} parent=23 // pred_region
          %198 = dma.done %s191, 128
        $region28: #{tpu_custom_call.1} parent=23 // pred_fallthru
          _
        %s199 = sand.u32 %s46, 1
        %s200 = scalar_lea.sflag [#allocation3], %s199
        %s201 = sand.u32 %s46, 1
        %s202 = smul.addr %s201, 8
        %s203 = scalar_lea.vmem [#allocation2], %s202
        %p204 = pneg %p59
        %p205 = pneg %p56
        %p206 = pneg %p87
        %p207 = pneg %p84
        %s208 = sand.u32 %s74, 1
        %s209 = scalar_lea.sflag [#allocation4], %s208
        %s210 = sand.u32 %s74, 1
        %s211 = smul.addr %s210, 8
        %s212 = scalar_lea.vmem [#allocation5], %s211
        %p213 = pneg %p115
        %p214 = pneg %p112
        %s215 = sand.u32 %s24, 1
        %s216 = scalar_lea.sflag [#allocation7], %s215
        %s217 = sand.u32 %s102, 1
        %s218 = smul.addr %s217, 2
        %s219 = scalar_lea.vmem [#allocation6], %s218
        %p220 = pneg %p143
        %p221 = pneg %p140
        %s222 = sand.u32 %s24, 1
        %s223 = scalar_lea.sflag [#allocation7], %s222
        %s224 = sand.u32 %s130, 1
        %s225 = smul.addr %s224, 2
        %s226 = scalar_lea.vmem [#allocation8], %s225
        %s227 = smul.u32 2, %s29
        %s228 = smul.u32 2, %s29
        %s229 = smul.u32 2, %s29
        %s230 = smul.u32 2, %s29
        %v231 = vld [vmem:[%s194] sm:$0xff]
        %v233 = vcombine.high %v231, %v231
        %vm235 = vcmask 1043456
        %v236 = vsel %vm235, %v231, 0.0
        %v237 = vrot.slane %v236, 4
        %v238 = vadd.f32 %v236, %v237
        %v239 = vrot.slane %v238, 2
        %v240 = vadd.f32 %v238, %v239
        %v241 = vrot.slane %v240, 1
        %v242 = vadd.f32 %v240, %v241
        %v243 = vsel %vm235, %v233, 0.0
        %v244 = vrot.slane %v243, 4
        %v245 = vadd.f32 %v243, %v244
        %v246 = vrot.slane %v245, 2
        %v247 = vadd.f32 %v245, %v246
        %v248 = vrot.slane %v247, 1
        %v249 = vadd.f32 %v247, %v248
        %v250 = vmul.f32 %v231, %v231
        %v252 = vcombine.high %v250, %v250
        %v254 = vsel %vm235, %v250, 0.0
        %v255 = vrot.slane %v254, 4
        %v256 = vadd.f32 %v254, %v255
        %v257 = vrot.slane %v256, 2
        %v258 = vadd.f32 %v256, %v257
        %v259 = vrot.slane %v258, 1
        %v260 = vadd.f32 %v258, %v259
        %v261 = vsel %vm235, %v252, 0.0
        %v262 = vrot.slane %v261, 4
        %v263 = vadd.f32 %v261, %v262
        %v264 = vrot.slane %v263, 2
        %v265 = vadd.f32 %v263, %v264
        %v266 = vrot.slane %v265, 1
        %v267 = vadd.f32 %v265, %v266
        %v268 = vmul.f32 %v242, 0.25
        %v269 = vmul.f32 %v249, 0.25
        %v270 = vmul.f32 %v242, %v268
        %v271 = vmul.f32 %v249, %v269
        %v272 = vsub.f32 %v260, %v270
        %v273 = vsub.f32 %v267, %v271
        %v274 = vrcp.pop 3.0
        %v275 = vmul.f32 %v272, %v274
        %v276 = vmul.f32 %v273, %v274
        %v277 = vmax.f32 %v275, 0.0
        %v278 = vmax.f32 %v276, 0.0
        %v279 = vadd.f32 %v277, 1e-05
        %v280 = vadd.f32 %v278, 1e-05
        %v281 = vrsqrt.pop %v279
        %v282 = vrsqrt.pop %v280
        %v285 = vcombine.low %v268, %v269
        %v287 = vsub.f32 %v231, %v285
        %v290 = vcombine.low %v281, %v282
        %v292 = vmul.f32 %v287, %v290
        %v293 = vmul.f32 %v279, %v281
        %v294 = vmul.f32 %v280, %v282
        %295 = vst [vmem:[%s212] sm:$0xff] %v292
        %v297 = vunpack.c.l.s4 1966171168
        %v298 = vunpack.c.0.s8 %v297
        %v299 = vlaneseq
        %v300 = vshrl.u32 %v299, 7
        %v301 = vsub.s32 %v298, %v300
        %v302 = vrot.slane %v285, %v301
        %v304 = vunpack.c.l.s4 1966171168
        %v305 = vunpack.c.0.s8 %v304
        %v306 = vlaneseq
        %v307 = vshrl.u32 %v306, 7
        %v308 = vsub.s32 %v305, %v307
        %v309 = vrot.slane %v302, %v308
        %v311 = vlaneseq
        %vm312 = vcmp.ge.s32.totalorder %v311, 0
        %vm313 = vcmp.lt.s32.totalorder %v311, 256
        %vm314 = vmand %vm312, %vm313
        %315 = vst.msk [vmem:[%s219] sm:$0x3] %vm314, %v309
        %v318 = vcombine.low %v293, %v294
        %v320 = vunpack.c.l.s4 1966171168
        %v321 = vunpack.c.0.s8 %v320
        %v322 = vlaneseq
        %v323 = vshrl.u32 %v322, 7
        %v324 = vsub.s32 %v321, %v323
        %v325 = vrot.slane %v318, %v324
        %v327 = vunpack.c.l.s4 1966171168
        %v328 = vunpack.c.0.s8 %v327
        %v329 = vlaneseq
        %v330 = vshrl.u32 %v329, 7
        %v331 = vsub.s32 %v328, %v330
        %v332 = vrot.slane %v325, %v331
        %334 = vst.msk [vmem:[%s226] sm:$0x3] %vm314, %v332
        %s335 = sand.u32 %s74, 1
        %s336 = scalar_lea.sflag [#allocation4], %s335
        %s337 = sand.u32 %s74, 1
        %s338 = smul.addr %s337, 8
        %s339 = scalar_lea.vmem [#allocation5], %s338
        %s340 = sand.u32 %s24, 1
        %s341 = scalar_lea.sflag [#allocation7], %s340
        %s342 = sand.u32 %s102, 1
        %s343 = smul.addr %s342, 2
        %s344 = scalar_lea.vmem [#allocation6], %s343
        %s345 = sand.u32 %s24, 1
        %s346 = scalar_lea.sflag [#allocation7], %s345
        %s347 = sand.u32 %s130, 1
        %s348 = smul.addr %s347, 2
        %s349 = scalar_lea.vmem [#allocation8], %s348
        // Predicated region
        $region29: #{tpu_custom_call.1} parent=23 // pred_check
          %p350 = pneg %p84
        $region30: #{tpu_custom_call.1} parent=23 // pred_check_branch
          %352 = sbr.rel (%p350) target = $region32
        $region31: #{tpu_custom_call.1} parent=23 // pred_region
          %s353 = smul.u32 2, %s29
          %s355 = ssub.s32 128, 128
          %356 = vsyncadd %s336, %s355
          %s357 = smul.addr %s28, 2
          %s358 = sadd.s32 %s353, %s357
          %s359 = smul.addr %s358, 64
          %s360 = scalar_lea.hbm %s1, %s359
          %s362 = sshll.u32 %s339, 4
          %s363 = int_to_ptr.vmem [resolvable:$true] %s362
          %365 = dma.vmem_to_hbm [thread:$0]  %s363, 128, %s360, %s336
        $region32: #{tpu_custom_call.1} parent=23 // pred_fallthru
          _
        // Predicated region
        $region33: #{tpu_custom_call.1} parent=23 // pred_check
          %p366 = pneg %p112
        $region34: #{tpu_custom_call.1} parent=23 // pred_check_branch
          %368 = sbr.rel (%p366) target = $region36
        $region35: #{tpu_custom_call.1} parent=23 // pred_region
          %s369 = smul.u32 2, %s29
          %s371 = ssub.s32 32, 32
          %372 = vsyncadd %s341, %s371
          %s373 = smul.addr %s28, 2
          %s374 = sadd.s32 %s369, %s373
          %s375 = smul.addr %s374, 16
          %s376 = scalar_lea.hbm %s2, %s375
          %s378 = sshll.u32 %s344, 4
          %s379 = int_to_ptr.vmem [resolvable:$true] %s378
          %381 = dma.vmem_to_hbm [thread:$0]  %s379, 32, %s376, %s341
        $region36: #{tpu_custom_call.1} parent=23 // pred_fallthru
          _
        // Predicated region
        $region37: #{tpu_custom_call.1} parent=23 // pred_check
          %p382 = pneg %p140
        $region38: #{tpu_custom_call.1} parent=23 // pred_check_branch
          %384 = sbr.rel (%p382) target = $region40
        $region39: #{tpu_custom_call.1} parent=23 // pred_region
          %s385 = smul.u32 2, %s29
          %s387 = ssub.s32 32, 32
          %388 = vsyncadd %s346, %s387
          %s389 = smul.addr %s28, 2
          %s390 = sadd.s32 %s385, %s389
          %s391 = smul.addr %s390, 16
          %s392 = scalar_lea.hbm %s3, %s391
          %s394 = sshll.u32 %s349, 4
          %s395 = int_to_ptr.vmem [resolvable:$true] %s394
          %397 = dma.vmem_to_hbm [thread:$0]  %s395, 32, %s392, %s346
        $region40: #{tpu_custom_call.1} parent=23 // pred_fallthru
          _
      $region24: #{tpu_custom_call.1} parent=5 // pred_fallthru
        _
      %p398 = scmp.le.s32.totalorder 2, %s19
      // Predicated region
      $region41: #{tpu_custom_call.1} parent=5 // pred_check
        %p399 = pneg %p398
      $region42: #{tpu_custom_call.1} parent=5 // pred_check_branch
        %401 = sbr.rel (%p399) target = $region44
      $region43: #{tpu_custom_call.1} parent=5 // pred_region
        %s402 = ssub.s32 %s19, 2
        // Predicated region
        $region45: #{tpu_custom_call.1} parent=43 // pred_check
          %p403 = pneg %p90
        $region46: #{tpu_custom_call.1} parent=43 // pred_check_branch
          %405 = sbr.rel (%p403) target = $region48
        $region47: #{tpu_custom_call.1} parent=43 // pred_region
          %s406 = sand.u32 %s75, 1
          %s407 = scalar_lea.sflag [#allocation4], %s406
          %s408 = sand.u32 %s75, 1
          %s409 = smul.addr %s408, 8
          %s410 = scalar_lea.vmem [#allocation5], %s409
          %411 = dma.done %s407, 128
        $region48: #{tpu_custom_call.1} parent=43 // pred_fallthru
          _
        // Predicated region
        $region49: #{tpu_custom_call.1} parent=43 // pred_check
          %p412 = pneg %p118
        $region50: #{tpu_custom_call.1} parent=43 // pred_check_branch
          %414 = sbr.rel (%p412) target = $region52
        $region51: #{tpu_custom_call.1} parent=43 // pred_region
          %s415 = sand.u32 %s25, 1
          %s416 = scalar_lea.sflag [#allocation7], %s415
          %s417 = sand.u32 %s103, 1
          %s418 = smul.addr %s417, 2
          %s419 = scalar_lea.vmem [#allocation6], %s418
          %420 = dma.done %s416, 32
        $region52: #{tpu_custom_call.1} parent=43 // pred_fallthru
          _
        // Predicated region
        $region53: #{tpu_custom_call.1} parent=43 // pred_check
          %p421 = pneg %p146
        $region54: #{tpu_custom_call.1} parent=43 // pred_check_branch
          %423 = sbr.rel (%p421) target = $region56
        $region55: #{tpu_custom_call.1} parent=43 // pred_region
          %s424 = sand.u32 %s25, 1
          %s425 = scalar_lea.sflag [#allocation7], %s424
          %s426 = sand.u32 %s131, 1
          %s427 = smul.addr %s426, 2
          %s428 = scalar_lea.vmem [#allocation8], %s427
          %429 = dma.done %s425, 32
        $region56: #{tpu_custom_call.1} parent=43 // pred_fallthru
          _
      $region44: #{tpu_custom_call.1} parent=5 // pred_fallthru
        _
    $region6: #{tpu_custom_call.1} parent=1 // loop_footer
      %s23 = sadd.s32 1, %s19
    $region7: #{tpu_custom_call.1} parent=1 // loop_footer_branch
      %18 = sbr.rel target = $region3
    $region8: #{tpu_custom_call.1} parent=1 // loop_exit
      _
    %430 = vsyncpa [#allocation3], 1
    %s431 = scalar_lea.sflag [#allocation3], 1
    %432 = vsyncpa %s431, 1
    %433 = vsyncpa [#allocation4], 1
    %s434 = scalar_lea.sflag [#allocation4], 1
    %435 = vsyncpa %s434, 1
    %436 = vsyncpa [#allocation7], 1
    %s437 = scalar_lea.sflag [#allocation7], 1
    %438 = vsyncpa %s437, 1

</llo_original>
